<compile_context>
chip_gen: v7x
topology: tpu7x:2x2x1
jax: 0.10.0
libtpu: 0.0.40
codegen_flags: <defaults>
</compile_context>

<pallas_src>
import functools

import jax
import jax.numpy as jnp
from jax.experimental import pallas as pl
from jax.experimental.pallas import tpu as pltpu


def _simam_kernel(x_ref, o_ref, *, hw, n, e_lambda):
    # x_ref: (TILE_ROWS, HW_P) block of channel-planes (native dtype).
    x = x_ref[...]
    xf = x.astype(jnp.float32)

    # One-pass moments over the spatial (lane) axis.
    sum_x = jnp.sum(xf, axis=-1, keepdims=True)
    sum_x2 = jnp.sum(xf * xf, axis=-1, keepdims=True)
    mu = sum_x * (1.0 / hw)
    # sum((x - mu)^2) = sum(x^2) - sum(x)^2 / hw  (clamp tiny negative rounding).
    s = jnp.maximum(sum_x2 - sum_x * mu, 0.0)

    d = xf - mu
    d2 = d * d
    # y = d2 / (4 * (s / n + e_lambda)) + 0.5
    # (exact reciprocal of a (rows, 1) column + broadcast multiply; the kernel
    #  is HBM-bound so approx=True would buy nothing and costs accuracy.)
    inv_denom = pl.reciprocal(4.0 * (s / n + e_lambda), approx=False)
    y = d2 * inv_denom + 0.5

    o_ref[...] = (xf * jax.nn.sigmoid(y)).astype(o_ref.dtype)


def simam(x, e_lambda=1e-5, *, tile_rows=None, target_block_bytes=4 << 20):
    """SimAM forward. x: (B, C, H, W) -> (B, C, H, W), same dtype."""
    b, c, h, w = x.shape
    hw = h * w
    # n = H*W - 1 exactly as in the PyTorch module (divides by zero for 1x1
    # spatial maps, matching the original's behavior).
    n = float(hw - 1)
    rows = b * c

    x2d = x.reshape(rows, hw)  # free (contiguous) reshape

    # Lane-dense last axis: pad H*W up to a multiple of 128 when needed so the
    # output stores are unmasked full-lane stores.  Zero padding does not leak
    # into the moments because the kernel divides by the true `hw`.
    hw_p = max(128, -(-hw // 128) * 128)
    if hw_p != hw:
        x2d = jnp.pad(x2d, ((0, 0), (0, hw_p - hw)))

    itemsize = jnp.dtype(x.dtype).itemsize
    row_align = 8 * max(1, 4 // itemsize)  # 8 for f32, 16 for bf16, 32 for int8
    if tile_rows is None:
        # Size the block so the f32 working tile is ~target_block_bytes.  With
        # double-buffered I/O plus a few f32 temporaries this stays comfortably
        # under the 48 MiB scoped-VMEM limit requested below on all of
        # v5e / v6e / v7x.
        tr = (target_block_bytes // (hw_p * 4)) // row_align * row_align
        tr = max(row_align, tr)
        tile_rows = min(tr, -(-rows // row_align) * row_align)
    # TODO(synk): for extremely large spatial maps (hw_p*4*row_align >> 8 MiB)
    # a second "arbitrary" grid axis over H*W with scratch accumulators would
    # be needed to keep blocks inside v7x VMEM; not required for CNN-scale maps.

    grid = (pl.cdiv(rows, tile_rows),)

    kernel = functools.partial(
        _simam_kernel, hw=float(hw), n=n, e_lambda=float(e_lambda)
    )

    out2d = pl.pallas_call(
        kernel,
        out_shape=jax.ShapeDtypeStruct((rows, hw_p), x.dtype),
        grid_spec=pltpu.PrefetchScalarGridSpec(
            num_scalar_prefetch=0,
            grid=grid,
            in_specs=[pl.BlockSpec((tile_rows, hw_p), lambda i: (i, 0))],
            out_specs=pl.BlockSpec((tile_rows, hw_p), lambda i: (i, 0)),
        ),
        compiler_params=pltpu.CompilerParams(
            dimension_semantics=("parallel",),
            vmem_limit_bytes=48 * 1024 * 1024,
        ),
    )(x2d)

    if hw_p != hw:
        out2d = out2d[:, :hw]
    return out2d.reshape(b, c, h, w)


def _simam_ref(x, e_lambda=1e-5):
    b, c, h, w = x.shape
    n = w * h - 1
    mu = jnp.mean(x, axis=(2, 3), keepdims=True)
    d2 = (x - mu) ** 2
    s = jnp.sum(d2, axis=(2, 3), keepdims=True)
    y = d2 / (4.0 * (s / n + e_lambda)) + 0.5
    return x * jax.nn.sigmoid(y)


if __name__ == "__main__":
    key = jax.random.PRNGKey(0)
    # SimAM has no learnable parameters (only the e_lambda hyperparameter).

    # Main case: lane-dense spatial size (16*16 = 256, multiple of 128).
    x = jax.random.normal(key, (2, 4, 16, 16), dtype=jnp.float32)
    out = jax.block_until_ready(simam(x, e_lambda=1e-5))
    ref = _simam_ref(x, e_lambda=1e-5)
    assert out.shape == x.shape and out.dtype == x.dtype
    assert jnp.allclose(out, ref, atol=1e-5, rtol=1e-5), "mismatch vs reference"

    # Secondary case: exercises the lane-padding (7*7 = 49 -> 128) and the
    # partial trailing row block (rows = 6, not a multiple of 8).
    x2 = jax.random.normal(jax.random.PRNGKey(1), (2, 3, 7, 7), dtype=jnp.float32)
    out2 = jax.block_until_ready(simam(x2, e_lambda=1e-5))
    ref2 = _simam_ref(x2, e_lambda=1e-5)
    assert out2.shape == x2.shape and out2.dtype == x2.dtype
    assert jnp.allclose(out2, ref2, atol=1e-5, rtol=1e-5), "mismatch (padded case)"

    print("KERNEL_OK")
</pallas_src>

<mosaic_0001>
module attributes {stable_mosaic.version = 11 : i64} {
  func.func @_simam_kernel(%arg0: i32, %arg1: memref<8x256xf32, #tpu.memory_space<vmem>>, %arg2: memref<8x256xf32, #tpu.memory_space<vmem>>) attributes {dimension_semantics = [#tpu.dimension_semantics<parallel>], iteration_bounds = array<i64: 1>, scalar_prefetch = 0 : i64, scratch_operands = 0 : i64, tpu.core_type = #tpu.core_type<tc>, window_params = [{transform_indices = @transform_0, window_bounds = array<i64: 8, 256>}, {transform_indices = @transform_1, window_bounds = array<i64: 8, 256>}]} {
    %c0 = arith.constant 0 : index
    %c0_0 = arith.constant 0 : index
    %0 = vector.load %arg1[%c0, %c0_0] : memref<8x256xf32, #tpu.memory_space<vmem>>, vector<8x256xf32>
    %cst = arith.constant dense<0.000000e+00> : vector<8xf32>
    %1 = vector.multi_reduction <add>, %0, %cst [1] : vector<8x256xf32> to vector<8xf32>
    %2 = vector.shape_cast %1 : vector<8xf32> to vector<8x1xf32>
    %3 = arith.mulf %0, %0 : vector<8x256xf32>
    %cst_1 = arith.constant dense<0.000000e+00> : vector<8xf32>
    %4 = vector.multi_reduction <add>, %3, %cst_1 [1] : vector<8x256xf32> to vector<8xf32>
    %5 = vector.shape_cast %4 : vector<8xf32> to vector<8x1xf32>
    %cst_2 = arith.constant 3.906250e-03 : f32
    %6 = vector.broadcast %cst_2 : f32 to vector<8x1xf32>
    %7 = arith.mulf %2, %6 : vector<8x1xf32>
    %8 = arith.mulf %2, %7 : vector<8x1xf32>
    %9 = arith.subf %5, %8 : vector<8x1xf32>
    %cst_3 = arith.constant 0.000000e+00 : f32
    %10 = vector.broadcast %cst_3 : f32 to vector<8x1xf32>
    %11 = arith.maximumf %9, %10 : vector<8x1xf32>
    %12 = vector.broadcast %7 : vector<8x1xf32> to vector<8x256xf32>
    %13 = arith.subf %0, %12 : vector<8x256xf32>
    %14 = arith.mulf %13, %13 : vector<8x256xf32>
    %cst_4 = arith.constant 2.550000e+02 : f32
    %15 = vector.broadcast %cst_4 : f32 to vector<8x1xf32>
    %16 = arith.divf %11, %15 : vector<8x1xf32>
    %cst_5 = arith.constant 9.99999974E-6 : f32
    %17 = vector.broadcast %cst_5 : f32 to vector<8x1xf32>
    %18 = arith.addf %16, %17 : vector<8x1xf32>
    %cst_6 = arith.constant 4.000000e+00 : f32
    %19 = vector.broadcast %cst_6 : f32 to vector<8x1xf32>
    %20 = arith.mulf %19, %18 : vector<8x1xf32>
    %21 = tpu.reciprocal %20 : vector<8x1xf32> -> vector<8x1xf32>
    %22 = vector.broadcast %21 : vector<8x1xf32> to vector<8x256xf32>
    %23 = arith.mulf %14, %22 : vector<8x256xf32>
    %cst_7 = arith.constant 5.000000e-01 : f32
    %24 = vector.broadcast %cst_7 : f32 to vector<8x256xf32>
    %25 = arith.addf %23, %24 : vector<8x256xf32>
    %26 = arith.negf %25 : vector<8x256xf32>
    %27 = math.exp %26 : vector<8x256xf32>
    %cst_8 = arith.constant 1.000000e+00 : f32
    %28 = vector.broadcast %cst_8 : f32 to vector<8x256xf32>
    %29 = arith.addf %28, %27 : vector<8x256xf32>
    %30 = arith.divf %28, %29 : vector<8x256xf32>
    %31 = arith.mulf %0, %30 : vector<8x256xf32>
    %c0_9 = arith.constant 0 : index
    %c0_10 = arith.constant 0 : index
    %32 = vector.load %arg2[%c0_9, %c0_10] : memref<8x256xf32, #tpu.memory_space<vmem>>, vector<8x256xf32>
    tpu.vector_store %arg2[%c0_9, %c0_10], %31 {strides = array<i32>} : memref<8x256xf32, #tpu.memory_space<vmem>>, vector<8x256xf32>,
    return
  }
  func.func @transform_0(%arg0: i32) -> (i32, i32) {
    %c0_i32 = arith.constant 0 : i32
    %c0_i32_0 = arith.constant 0 : i32
    return %arg0, %c0_i32 : i32, i32
  }
  func.func @transform_1(%arg0: i32) -> (i32, i32) {
    %c0_i32 = arith.constant 0 : i32
    %c0_i32_0 = arith.constant 0 : i32
    return %arg0, %c0_i32 : i32, i32
  }
}

</mosaic_0001>

<llo_original>
// kernel: tpu_custom_call.1
$region0: #{tpu_custom_call.1}
  #allocation0 [shape = 'u32[]', space=smem, size = 0x4, offset = 0x4, fixed_abs, tag = 'smem constant byte address 0x4 - core index']
  #allocation1 [shape = 'u32[144,128]{1,0:T(1,128)}', space=vmem, size = 0x12000, scoped, tag = 'internal scratch']
  %s0 = inlined_call_operand.hbm [shape: f32[8,256], index: 0, kind: input, shape index: {}]
  %s1 = inlined_call_operand.hbm [shape: f32[8,256], index: 1, kind: output, shape index: {}]
  %s2 = sld [smem:[#allocation0]]
  $region18: #{tpu_custom_call.1} parent=0
    _
  %s4 = ssub.s32 1, %s2
  %s5 = scalar_select 0, %s4, %s2
  $region1: #{tpu_custom_call.1} parent=0
    #allocation2 [shape = 'u8[8192]{0}', space=vmem, size = 0x2000, scoped, tag = 'input window, operand 0, single buffered']
    #allocation3 [shape = 's32[1]{0}', space=sflag, size = 0x4, scoped, tag = 'scoped memory for tpu_custom_call.1']
    #allocation4 [shape = 's32[1]{0}', space=sflag, size = 0x4, scoped, tag = 'scoped memory for tpu_custom_call.1']
    #allocation5 [shape = 'u8[8192]{0}', space=vmem, size = 0x2000, scoped, tag = 'output window, operand 0, single buffered']
    %6 = vsyncpa [#allocation3], 0
    %7 = vsyncpa [#allocation4], 0
    // Predicated region
    $region2: #{tpu_custom_call.1} parent=1 // pred_check
      _
    $region3: #{tpu_custom_call.1} parent=1 // pred_check_branch
      %9 = sbr.rel (0) target = $region5
    $region4: #{tpu_custom_call.1} parent=1 // pred_region
      %s11 = ssub.s32 256, 256
      %12 = vsyncadd [#allocation3], %s11
      %s14 = sshll.u32 [#allocation2], 4
      %s15 = int_to_ptr.vmem [resolvable:$true] %s14
      %17 = dma.hbm_to_vmem [thread:$0]  %s0, 256, %s15, [#allocation3]
    $region5: #{tpu_custom_call.1} parent=1 // pred_fallthru
      _
    // Predicated region
    $region6: #{tpu_custom_call.1} parent=1 // pred_check
      _
    $region7: #{tpu_custom_call.1} parent=1 // pred_check_branch
      %19 = sbr.rel (0) target = $region9
    $region8: #{tpu_custom_call.1} parent=1 // pred_region
      %20 = dma.done [#allocation3], 256
    $region9: #{tpu_custom_call.1} parent=1 // pred_fallthru
      _
    %v21 = vld [vmem:[#allocation2] sm:$0xff]
    %v22 = vld [vmem:[#allocation2 + $0x8] sm:$0xff]
    %v23 = vadd.f32 %v21, %v22
    %24 = vadd.xlane.f32.xlu0 %v23
    %v25 = vpop.xlane.xlu0 %24
    %v26 = vmul.f32 %v21, %v21
    %v27 = vmul.f32 %v22, %v22
    %v28 = vadd.f32 %v26, %v27
    %29 = vadd.xlane.f32.xlu0 %v28
    %v30 = vpop.xlane.xlu0 %29
    %v31 = vmul.f32 %v25, 0.00390625
    %v32 = vmul.f32 %v25, %v31
    %v33 = vsub.f32 %v30, %v32
    %v34 = vmax.f32 %v33, 0.0
    %v35 = vsub.f32 %v21, %v31
    %v36 = vsub.f32 %v22, %v31
    %v37 = vmul.f32 %v35, %v35
    %v38 = vmul.f32 %v36, %v36
    %v39 = vrcp.pop 255.0
    %v40 = vmul.f32 %v34, %v39
    %v41 = vadd.f32 %v40, 1e-05
    %v42 = vmul.f32 %v41, 4.0
    %v43 = vrcp.pop %v42
    %v44 = vmul.f32 %v37, %v43
    %v45 = vmul.f32 %v38, %v43
    %v46 = vadd.f32 %v44, 0.5
    %v47 = vadd.f32 %v45, 0.5
    %v48 = vxor.u32 %v46, 2147483648
    %v49 = vxor.u32 %v47, 2147483648
    %v50 = vmul.f32 %v48, 1.442695
    %v51 = vpow.pop %v50
    %v52 = vmul.f32 %v49, 1.442695
    %v53 = vpow.pop %v52
    %v54 = vadd.f32 %v51, 1.0
    %v55 = vadd.f32 %v53, 1.0
    %v56 = vrcp.pop %v54
    %v57 = vmul.f32 1.0, %v56
    %v58 = vrcp.pop %v55
    %v59 = vmul.f32 1.0, %v58
    %v60 = vmul.f32 %v21, %v57
    %v61 = vmul.f32 %v22, %v59
    %62 = vst [vmem:[#allocation5] sm:$0xff] %v60
    %63 = vst [vmem:[#allocation5 + $0x8] sm:$0xff] %v61
    // Predicated region
    $region10: #{tpu_custom_call.1} parent=1 // pred_check
      _
    $region11: #{tpu_custom_call.1} parent=1 // pred_check_branch
      %65 = sbr.rel (0) target = $region13
    $region12: #{tpu_custom_call.1} parent=1 // pred_region
      %s67 = ssub.s32 256, 256
      %68 = vsyncadd [#allocation4], %s67
      %s70 = sshll.u32 [#allocation5], 4
      %s71 = int_to_ptr.vmem [resolvable:$true] %s70
      %73 = dma.vmem_to_hbm [thread:$0]  %s71, 256, %s1, [#allocation4]
    $region13: #{tpu_custom_call.1} parent=1 // pred_fallthru
      _
    // Predicated region
    $region14: #{tpu_custom_call.1} parent=1 // pred_check
      _
    $region15: #{tpu_custom_call.1} parent=1 // pred_check_branch
      %75 = sbr.rel (0) target = $region17
    $region16: #{tpu_custom_call.1} parent=1 // pred_region
      %76 = dma.done [#allocation4], 256
    $region17: #{tpu_custom_call.1} parent=1 // pred_fallthru
      _
    %77 = vsyncpa [#allocation3], 1
    %78 = vsyncpa [#allocation4], 1

</llo_original>
